<compile_context>
chip_gen: v6e
topology: v6e:2x2x1
jax: 0.10.0
libtpu: 0.0.40
codegen_flags: <defaults>
</compile_context>

<pallas_src>
import functools

import jax
import jax.numpy as jnp
from jax.experimental import pallas as pl
from jax.experimental.pallas import tpu as pltpu


def _conv_ps_prelu_kernel(x_ref, w_ref, a_ref, o_ref):
    """Fused 3x3 conv (+bias, +PReLU) as one MXU matmul, pixel-shuffle lane order.

    x_ref: (Nb, H, K_pad)    bf16 im2row rows: 3 dy windows ++ ones-lane ++ zero pad
    w_ref: (K_pad, W*Cout)   bf16 stacked banded weights (+ bias row), columns in
                             pixel-shuffle (c, i, w, j) order
    a_ref: (1,)              f32 PReLU alpha (SMEM, scalar path)
    o_ref: (Nb, H, W*Cout)   lane-dense output block
    """
    nb, h, wco = o_ref.shape
    k = x_ref.shape[2]
    lhs = x_ref[...].reshape(nb * h, k)            # free view: k % 128 == 0, h % 8 == 0
    acc = jnp.dot(lhs, w_ref[...], preferred_element_type=jnp.float32)
    alpha = a_ref[0]
    out = jnp.where(acc > 0, acc, alpha * acc)
    o_ref[...] = out.reshape(nb, h, wco).astype(o_ref.dtype)


def prepare_upsample_params(weight_oihw, bias, up_scale, width):
    """Build the conv-as-matmul banded weight ONCE at weight-load time.

    Returns b_banded of shape (K_pad, width*Cin*r^2) in bf16, where
    K_pad = round_up(3*(width+2)*Cin + 1, 128).  Row 3*(width+2)*Cin is the bias
    row (paired with a ones-lane appended to the im2row LHS).  Columns are in
    pixel-shuffle (c, i, w, j) order.
    """
    cout, cin, kh, kw = weight_oihw.shape
    assert (kh, kw) == (3, 3)
    r = up_scale
    assert cout == cin * r * r
    W = width

    w_hwio = jnp.transpose(weight_oihw, (2, 3, 1, 0)).astype(jnp.float32)  # (3,3,Cin,Cout)
    eye_w = jnp.eye(W, dtype=jnp.float32)
    per_dy = []
    for dy in range(3):
        b = jnp.zeros(((W + 2) * cin, W * cout), jnp.float32)
        for dx in range(3):
            blockdiag = jnp.kron(eye_w, w_hwio[dy, dx])            # (W*Cin, W*Cout)
            b = b + jnp.pad(blockdiag, ((dx * cin, (2 - dx) * cin), (0, 0)))
        per_dy.append(b)
    b_full = jnp.concatenate(per_dy, axis=0)                       # (3*(W+2)*Cin, W*Cout)

    k = 3 * (W + 2) * cin
    # Column permutation (w, c, i, j) -> (c, i, w, j): kernel output rows come out
    # already pixel-shuffled (contiguous W*r runs per (c, i)).
    b_full = (b_full.reshape(k, W, cin, r, r)
              .transpose(0, 2, 3, 1, 4)
              .reshape(k, W * cout))
    bias_lanes = jnp.broadcast_to(
        bias.astype(jnp.float32).reshape(cin, r, 1, r), (cin, r, W, r)
    ).reshape(1, W * cout)

    k_pad = ((k + 1 + 127) // 128) * 128
    b_aug = jnp.concatenate([b_full, bias_lanes], axis=0)          # (k+1, W*Cout)
    b_aug = jnp.pad(b_aug, ((0, k_pad - (k + 1)), (0, 0)))
    return b_aug.astype(jnp.bfloat16)


def _pick_batch_block(n, per_img_bytes, budget_bytes=2 << 20):
    """Largest divisor of n that keeps >=2 grid steps (v7x megacore) and small blocks."""
    cap = max(1, min((n + 1) // 2, budget_bytes // max(per_img_bytes, 1)))
    nb = 1
    for d in range(1, min(cap, n) + 1):
        if n % d == 0:
            nb = d
    return nb


@functools.partial(jax.jit, static_argnames=("up_scale",))
def upsample_block(x_nchw, b_banded, prelu_alpha, up_scale):
    """Forward pass of UpsampleBLock (conv3x3 pad=1 -> PixelShuffle(r) -> PReLU).

    x_nchw:      (N, Cin, H, W) float32
    b_banded:    (K_pad, W*Cin*r^2) bf16 from prepare_upsample_params
    prelu_alpha: scalar (single-parameter nn.PReLU)
    returns:     (N, Cin, H*r, W*r) float32, matching PyTorch semantics
    """
    n, cin, h, w = x_nchw.shape
    r = up_scale
    cout = cin * r * r
    wco = w * cout
    k = 3 * (w + 2) * cin
    k_pad = b_banded.shape[0]
    assert b_banded.shape == (k_pad, wco)
    assert k_pad % 128 == 0 and k_pad >= k + 1

    prelu_alpha = jnp.asarray(prelu_alpha, jnp.float32)
    # In-kernel PReLU-before-shuffle is only valid for a single shared alpha.
    assert prelu_alpha.size == 1, "only single-parameter PReLU is supported"
    alpha_smem = prelu_alpha.reshape(1)

    # ---- input prep: NCHW -> zero-padded NHWC im2row rows (one tiny XLA pass) ----
    # TODO(synk): fuse this prep + the epilogue transpose into an H-tiled halo
    # kernel with im2col weights for production SRGAN shapes.
    x_nhwc = jnp.transpose(x_nchw, (0, 2, 3, 1))
    x_pad = jnp.pad(x_nhwc, ((0, 0), (1, 1), (1, 1), (0, 0)))
    wins = [x_pad[:, dy:dy + h].reshape(n, h, (w + 2) * cin) for dy in range(3)]
    ones = jnp.ones((n, h, 1), x_nchw.dtype)        # feeds the bias row of b_banded
    zpad = jnp.zeros((n, h, k_pad - k - 1), x_nchw.dtype)
    x_rows = jnp.concatenate(wins + [ones, zpad], axis=-1).astype(jnp.bfloat16)

    per_img_bytes = h * (k_pad * 2 + wco * 4)
    nb = _pick_batch_block(n, per_img_bytes)
    grid = (n // nb,)

    # Right-sized VMEM: double-buffered in/out blocks + resident weight + headroom.
    x_blk_bytes = nb * h * k_pad * 2
    o_blk_bytes = nb * h * wco * 4
    w_bytes = k_pad * wco * 2
    vmem_limit = int(min(64 << 20,
                         max(1 << 20,
                             2 * (x_blk_bytes + o_blk_bytes + w_bytes) + (256 << 10))))

    # FLOPs the MXU actually executes against the (mostly structural-zero) banded RHS.
    flops = 2 * n * h * k_pad * wco
    bytes_accessed = n * h * k_pad * 2 + k_pad * wco * 2 + 4 + n * h * wco * 4

    y = pl.pallas_call(
        _conv_ps_prelu_kernel,
        out_shape=jax.ShapeDtypeStruct((n, h, wco), x_nchw.dtype),
        grid_spec=pltpu.PrefetchScalarGridSpec(
            num_scalar_prefetch=0,
            grid=grid,
            in_specs=[
                pl.BlockSpec((nb, h, k_pad), lambda i: (i, 0, 0)),
                pl.BlockSpec((k_pad, wco), lambda i: (0, 0)),      # resident weight
                pl.BlockSpec(memory_space=pltpu.MemorySpace.SMEM),  # alpha scalar
            ],
            out_specs=pl.BlockSpec((nb, h, wco), lambda i: (i, 0, 0)),
        ),
        compiler_params=pltpu.CompilerParams(
            dimension_semantics=("parallel",),
            vmem_limit_bytes=vmem_limit,
        ),
        cost_estimate=pl.CostEstimate(
            flops=flops, transcendentals=0, bytes_accessed=bytes_accessed),
    )(x_rows, b_banded, alpha_smem)

    # Columns are already in (c, i, w*r+j) order -> coarse transpose of contiguous
    # W*r-length runs (no stride-r interleave pass).
    y = y.reshape(n, h, cin, r, w * r)
    y = jnp.transpose(y, (0, 2, 1, 3, 4))
    return y.reshape(n, cin, h * r, w * r)


def _reference(x_nchw, weight_oihw, bias, prelu_alpha, up_scale):
    """Pure-JAX f32 reference (conv_general_dilated + pixel shuffle + PReLU)."""
    N, Cin, H, W = x_nchw.shape
    r = up_scale
    y = jax.lax.conv_general_dilated(
        x_nchw, weight_oihw, window_strides=(1, 1), padding=((1, 1), (1, 1)),
        dimension_numbers=("NCHW", "OIHW", "NCHW"))
    y = y + bias.reshape(1, -1, 1, 1)
    y = y.reshape(N, Cin, r, r, H, W)
    y = jnp.transpose(y, (0, 1, 4, 2, 5, 3)).reshape(N, Cin, H * r, W * r)
    return jnp.where(y > 0, y, prelu_alpha * y)


if __name__ == "__main__":
    # Small shapes consistent with the module: batch=2, in_channels=4,
    # spatial=16, up_scale=2 -> conv out channels = 4 * 2^2 = 16.
    N, Cin, H, W = 2, 4, 16, 16
    up_scale = 2
    Cout = Cin * up_scale ** 2

    key = jax.random.PRNGKey(0)
    kx, kw, kb = jax.random.split(key, 3)

    x = jax.random.normal(kx, (N, Cin, H, W), dtype=jnp.float32)

    # Deterministic synthetic parameters (shapes from nn.Conv2d / nn.PReLU).
    fan_in = Cin * 3 * 3
    bound = 1.0 / (fan_in ** 0.5)
    weight = jax.random.uniform(kw, (Cout, Cin, 3, 3), jnp.float32,
                                minval=-bound, maxval=bound)
    bias = jax.random.uniform(kb, (Cout,), jnp.float32,
                              minval=-bound, maxval=bound)
    prelu_alpha = jnp.float32(0.25)  # nn.PReLU() default single parameter

    # One-time weight prep (hoisted out of the per-call forward).
    b_banded = jax.block_until_ready(prepare_upsample_params(weight, bias, up_scale, W))

    out = upsample_block(x, b_banded, prelu_alpha, up_scale)
    out = jax.block_until_ready(out)

    ref = _reference(x, weight, bias, prelu_alpha, up_scale)
    assert out.shape == (N, Cin, H * up_scale, W * up_scale), out.shape
    # bf16 MXU operands (f32 accumulate) -> tolerance loosened vs the f32 reference.
    max_err = float(jnp.max(jnp.abs(out - ref)))
    assert jnp.allclose(out, ref, rtol=2e-2, atol=2e-2), f"mismatch vs reference: {max_err}"

    print("KERNEL_OK")
</pallas_src>

<mosaic_0001>
module attributes {stable_mosaic.version = 11 : i64} {
  func.func @_conv_ps_prelu_kernel(%arg0: i32, %arg1: memref<1x16x256xbf16, #tpu.memory_space<vmem>>, %arg2: memref<256x256xbf16, #tpu.memory_space<vmem>>, %arg3: memref<1xf32, #tpu.memory_space<smem>>, %arg4: memref<1x16x256xf32, #tpu.memory_space<vmem>>) attributes {dimension_semantics = [#tpu.dimension_semantics<parallel>], iteration_bounds = array<i64: 2>, scalar_prefetch = 0 : i64, scratch_operands = 0 : i64, tpu.core_type = #tpu.core_type<tc>, window_params = [{transform_indices = @transform_0, window_bounds = array<i64: 1, 16, 256>}, {pipeline_mode = #tpu.pipeline_mode<synchronous>, transform_indices = @transform_1, window_bounds = array<i64: 256, 256>}, {transform_indices = @transform_2, window_bounds = array<i64: 1>}, {transform_indices = @transform_3, window_bounds = array<i64: 1, 16, 256>}]} {
    %c0 = arith.constant 0 : index
    %c0_0 = arith.constant 0 : index
    %c0_1 = arith.constant 0 : index
    %0 = vector.load %arg1[%c0, %c0_0, %c0_1] : memref<1x16x256xbf16, #tpu.memory_space<vmem>>, vector<1x16x256xbf16>
    %1 = vector.shape_cast %0 : vector<1x16x256xbf16> to vector<16x256xbf16>
    %c0_2 = arith.constant 0 : index
    %c0_3 = arith.constant 0 : index
    %2 = vector.load %arg2[%c0_2, %c0_3] : memref<256x256xbf16, #tpu.memory_space<vmem>>, vector<256x256xbf16>
    %cst = arith.constant dense<0.000000e+00> : vector<16x256xf32>
    %3 = tpu.matmul %1, %2, %cst {dimension_numbers = #tpu.dot_dimension_numbers<[1], [0], [0], [1], [0, 0, 1, 1], [], []>} : vector<16x256xbf16>, vector<256x256xbf16>, vector<16x256xf32> -> vector<16x256xf32>
    %c0_4 = arith.constant 0 : index
    %4 = memref.load %arg3[%c0_4] : memref<1xf32, #tpu.memory_space<smem>>
    %cst_5 = arith.constant 0.000000e+00 : f32
    %5 = vector.broadcast %cst_5 : f32 to vector<16x256xf32>
    %6 = arith.cmpf ogt, %3, %5 : vector<16x256xf32>
    %7 = vector.broadcast %4 : f32 to vector<16x256xf32>
    %8 = arith.mulf %7, %3 : vector<16x256xf32>
    %9 = arith.select %6, %3, %8 : vector<16x256xi1>, vector<16x256xf32>
    %10 = vector.shape_cast %9 : vector<16x256xf32> to vector<1x16x256xf32>
    %c0_6 = arith.constant 0 : index
    %c0_7 = arith.constant 0 : index
    %c0_8 = arith.constant 0 : index
    %11 = vector.load %arg4[%c0_6, %c0_7, %c0_8] : memref<1x16x256xf32, #tpu.memory_space<vmem>>, vector<1x16x256xf32>
    tpu.vector_store %arg4[%c0_6, %c0_7, %c0_8], %10 {strides = array<i32>} : memref<1x16x256xf32, #tpu.memory_space<vmem>>, vector<1x16x256xf32>,
    return
  }
  func.func @transform_0(%arg0: i32) -> (i32, i32, i32) {
    %c0_i32 = arith.constant 0 : i32
    %c0_i32_0 = arith.constant 0 : i32
    %c0_i32_1 = arith.constant 0 : i32
    return %arg0, %c0_i32, %c0_i32_0 : i32, i32, i32
  }
  func.func @transform_1(%arg0: i32) -> (i32, i32) {
    %c0_i32 = arith.constant 0 : i32
    %c0_i32_0 = arith.constant 0 : i32
    %c0_i32_1 = arith.constant 0 : i32
    return %c0_i32, %c0_i32_0 : i32, i32
  }
  func.func @transform_2(%arg0: i32) -> i32 {
    %c0_i32 = arith.constant 0 : i32
    %c0_i32_0 = arith.constant 0 : i32
    return %c0_i32 : i32
  }
  func.func @transform_3(%arg0: i32) -> (i32, i32, i32) {
    %c0_i32 = arith.constant 0 : i32
    %c0_i32_0 = arith.constant 0 : i32
    %c0_i32_1 = arith.constant 0 : i32
    return %arg0, %c0_i32, %c0_i32_0 : i32, i32, i32
  }
}

</mosaic_0001>

<llo_original>
// kernel: upsample_block.1
$region0: #{upsample_block.1}
  #allocation0 [shape = 'u32[]', space=smem, size = 0x4, offset = 0x4, fixed_abs, tag = 'smem constant byte address 0x4 - core index']
  #allocation1 [shape = 'u32[144,128]{1,0:T(1,128)}', space=vmem, size = 0x12000, scoped, tag = 'internal scratch']
  #allocation2 [shape = 'f32[1]{0:T(128)S(6)}', space=smem, size = 0x200, scoped, tag = 'scoped memory for upsample_block.1']
  %s0 = inlined_call_operand.vmem [shape: bf16[2,16,256], index: 0, kind: input, shape index: {}]
  %s1 = inlined_call_operand.vmem [shape: bf16[256,256], index: 1, kind: input, shape index: {}]
  %s2 = inlined_call_operand.<no memory space> [shape: f32[1], index: 2, kind: input, shape index: {}]
  %s3 = inlined_call_operand.vmem [shape: f32[2,16,256], index: 3, kind: output, shape index: {}]
  %s4 = sld [smem:[#allocation0]]
  $region45: #{upsample_block.1} parent=0
    _
  %s6 = ssub.s32 1, %s4
  %s7 = scalar_select 0, %s6, %s4
  %8 = sst [smem:[#allocation2]] %s2
  loop: start=0, step=1, limit=4
  $region2: #{upsample_block.1} parent=0 // loop_pre_header
    _
  $region3: #{upsample_block.1} parent=0 // loop_header
    %s10 = sphi 0, %s14
    %p11 = scmp.ge.s32.totalorder %s10, 4
    %s20 = sphi 0, %s22
    %s23 = sphi 0, %s20
    %s24 = sphi 0, %s23
    %s40 = sphi 0, %s24
    %s44 = sphi 0, %s44
    %s46 = sphi 0, %s44
    %s47 = sphi 0, %s46
    %s61 = sphi 0, %s47
    %s65 = sphi 0, %s65
    %s67 = sphi 0, %s65
    %s68 = sphi 0, %s67
    %s82 = sphi 0, %s68
    %s88 = sphi 0, %s90
    %s91 = sphi 0, %s88
    %s92 = sphi 0, %s91
    %s108 = sphi 0, %s92
  $region4: #{upsample_block.1} parent=0 // loop_header_branch
    %13 = sbr.rel (%p11) target = $region8
  $region5: #{upsample_block.1} parent=0 // loop_body
    %s15 = ssub.s32 %s10, 1
    %s16 = ssub.s32 %s10, 2
    %s17 = sadd.s32 %s10, 1
    %s18 = ssub.s32 %s10, %s17
    %p19 = scmp.eq.s32.totalorder %s18, 0
    %s21 = sadd.s32 %s20, 1
    %s22 = scalar_select %p19, %s20, %s21
    %p25 = pneg %p19
    %p26 = scmp.eq.s32.totalorder %s10, 1
    %p27 = por %p25, %p26
    %p28 = scmp.ne.s32.totalorder %s20, %s23
    %p29 = scmp.eq.s32.totalorder %s10, 0
    %p30 = por %p28, %p29
    %p31 = scmp.ne.s32.totalorder %s20, %s23
    %p32 = scmp.eq.s32.totalorder %s15, 1
    %p33 = por %p31, %p32
    %p34 = scmp.ne.s32.totalorder %s23, %s24
    %p35 = scmp.eq.s32.totalorder %s15, 0
    %p36 = por %p34, %p35
    %p37 = scmp.ne.s32.totalorder %s23, %s24
    %p38 = scmp.eq.s32.totalorder %s16, 1
    %p39 = por %p37, %p38
    %p41 = scmp.ne.s32.totalorder %s24, %s40
    %p42 = scmp.eq.s32.totalorder %s16, 0
    %p43 = por %p41, %p42
    %s45 = sadd.s32 %s44, 1
    %p48 = scmp.eq.s32.totalorder %s10, 1
    %p49 = scmp.ne.s32.totalorder %s44, %s46
    %p50 = scmp.eq.s32.totalorder %s10, 0
    %p51 = por %p49, %p50
    %p52 = scmp.ne.s32.totalorder %s44, %s46
    %p53 = scmp.eq.s32.totalorder %s15, 1
    %p54 = por %p52, %p53
    %p55 = scmp.ne.s32.totalorder %s46, %s47
    %p56 = scmp.eq.s32.totalorder %s15, 0
    %p57 = por %p55, %p56
    %p58 = scmp.ne.s32.totalorder %s46, %s47
    %p59 = scmp.eq.s32.totalorder %s16, 1
    %p60 = por %p58, %p59
    %p62 = scmp.ne.s32.totalorder %s47, %s61
    %p63 = scmp.eq.s32.totalorder %s16, 0
    %p64 = por %p62, %p63
    %s66 = sadd.s32 %s65, 1
    %p69 = scmp.eq.s32.totalorder %s10, 1
    %p70 = scmp.ne.s32.totalorder %s65, %s67
    %p71 = scmp.eq.s32.totalorder %s10, 0
    %p72 = por %p70, %p71
    %p73 = scmp.ne.s32.totalorder %s65, %s67
    %p74 = scmp.eq.s32.totalorder %s15, 1
    %p75 = por %p73, %p74
    %p76 = scmp.ne.s32.totalorder %s67, %s68
    %p77 = scmp.eq.s32.totalorder %s15, 0
    %p78 = por %p76, %p77
    %p79 = scmp.ne.s32.totalorder %s67, %s68
    %p80 = scmp.eq.s32.totalorder %s16, 1
    %p81 = por %p79, %p80
    %p83 = scmp.ne.s32.totalorder %s68, %s82
    %p84 = scmp.eq.s32.totalorder %s16, 0
    %p85 = por %p83, %p84
    %s86 = ssub.s32 %s10, %s17
    %p87 = scmp.eq.s32.totalorder %s86, 0
    %s89 = sadd.s32 %s88, 1
    %s90 = scalar_select %p87, %s88, %s89
    %p93 = pneg %p87
    %p94 = scmp.eq.s32.totalorder %s10, 1
    %p95 = por %p93, %p94
    %p96 = scmp.ne.s32.totalorder %s88, %s91
    %p97 = scmp.eq.s32.totalorder %s10, 0
    %p98 = por %p96, %p97
    %p99 = scmp.ne.s32.totalorder %s88, %s91
    %p100 = scmp.eq.s32.totalorder %s15, 1
    %p101 = por %p99, %p100
    %p102 = scmp.ne.s32.totalorder %s91, %s92
    %p103 = scmp.eq.s32.totalorder %s15, 0
    %p104 = por %p102, %p103
    %p105 = scmp.ne.s32.totalorder %s91, %s92
    %p106 = scmp.eq.s32.totalorder %s16, 1
    %p107 = por %p105, %p106
    %p109 = scmp.ne.s32.totalorder %s92, %s108
    %p110 = scmp.eq.s32.totalorder %s16, 0
    %p111 = por %p109, %p110
    %p112 = scmp.le.s32.totalorder 1, %s10
    %p113 = scmp.lt.s32.totalorder %s10, 3
    %p114 = pnand %p112, %p113
    %p115 = pneg %p114
    // Predicated region
    $region9: #{upsample_block.1} parent=5 // pred_check
      _
    $region10: #{upsample_block.1} parent=5 // pred_check_branch
      %117 = sbr.rel (%p114) target = $region12
    $region11: #{upsample_block.1} parent=5 // pred_region
      %s118 = ssub.s32 %s10, 1
      // Predicated region
      $region13: #{upsample_block.1} parent=11 // pred_check
        %p119 = pneg %p57
      $region14: #{upsample_block.1} parent=11 // pred_check_branch
        %121 = sbr.rel (%p119) target = $region16
      $region15: #{upsample_block.1} parent=11 // pred_region
        _
      $region16: #{upsample_block.1} parent=11 // pred_fallthru
        _
      // Predicated region
      $region17: #{upsample_block.1} parent=11 // pred_check
        %p122 = pneg %p78
      $region18: #{upsample_block.1} parent=11 // pred_check_branch
        %124 = sbr.rel (%p122) target = $region20
      $region19: #{upsample_block.1} parent=11 // pred_region
        _
      $region20: #{upsample_block.1} parent=11 // pred_fallthru
        _
    $region12: #{upsample_block.1} parent=5 // pred_fallthru
      _
    %p125 = scmp.lt.s32.totalorder %s10, 2
    // Predicated region
    $region21: #{upsample_block.1} parent=5 // pred_check
      %p126 = pneg %p125
    $region22: #{upsample_block.1} parent=5 // pred_check_branch
      %128 = sbr.rel (%p126) target = $region24
    $region23: #{upsample_block.1} parent=5 // pred_region
      // Predicated region
      $region25: #{upsample_block.1} parent=23 // pred_check
        %p129 = pneg %p30
      $region26: #{upsample_block.1} parent=23 // pred_check_branch
        %131 = sbr.rel (%p129) target = $region28
      $region27: #{upsample_block.1} parent=23 // pred_region
        %p132 = scmp.lt.s32.totalorder %s10, 1
        %s133 = scalar_select %p132, %s10, 1
        %s134 = smul.addr %s133, 4
        %s135 = smul.addr %s134, 4
        %s136 = scalar_lea.vmem %s0, %s135
      $region28: #{upsample_block.1} parent=23 // pred_fallthru
        _
    $region24: #{upsample_block.1} parent=5 // pred_fallthru
      _
    %p137 = scmp.le.s32.totalorder 1, %s10
    %p138 = scmp.lt.s32.totalorder %s10, 3
    %p139 = pnand %p137, %p138
    %p140 = pneg %p139
    // Predicated region
    $region29: #{upsample_block.1} parent=5 // pred_check
      _
    $region30: #{upsample_block.1} parent=5 // pred_check_branch
      %142 = sbr.rel (%p139) target = $region32
    $region31: #{upsample_block.1} parent=5 // pred_region
      %s143 = ssub.s32 %s10, 1
      %p144 = scmp.lt.s32.totalorder %s15, 1
      %s145 = scalar_select %p144, %s15, 1
      %s146 = smul.addr %s145, 4
      %s147 = smul.addr %s146, 4
      %s148 = scalar_lea.vmem %s0, %s147
      %p149 = pneg %p36
      %p150 = pneg %p33
      %p151 = pneg %p57
      %p152 = pneg %p54
      %p153 = pneg %p78
      %p154 = pneg %p75
      %p155 = pneg %p104
      %p156 = pneg %p101
      %p157 = scmp.lt.s32.totalorder %s15, 1
      %s158 = scalar_select %p157, %s15, 1
      %s159 = smul.addr %s158, 4
      %s160 = smul.addr %s159, 8
      %s161 = scalar_lea.vmem %s3, %s160
      %p162 = scmp.lt.s32.totalorder %s15, 1
      %s163 = scalar_select %p162, %s15, 1
      %s164 = smul.addr %s163, 4
      %s165 = smul.addr %s164, 4
      %s166 = scalar_lea.vmem %s0, %s165
      %p167 = scmp.lt.s32.totalorder %s15, 1
      %s168 = scalar_select %p167, %s15, 1
      %s169 = smul.addr %s168, 4
      %s170 = smul.addr %s169, 8
      %s171 = scalar_lea.vmem %s3, %s170
      %v172 = vld [vmem:[%s166] sm:$0xff]
      %v173 = vld [vmem:[%s166 + $0x8] sm:$0xff]
      %v174 = vld [vmem:[%s1] sm:$0xff]
      %v175 = vld [vmem:[%s1 + $0x8] sm:$0xff]
      %v176 = vld [vmem:[%s1 + $0x10] sm:$0xff]
      %v177 = vld [vmem:[%s1 + $0x18] sm:$0xff]
      %v178 = vld [vmem:[%s1 + $0x20] sm:$0xff]
      %v179 = vld [vmem:[%s1 + $0x28] sm:$0xff]
      %v180 = vld [vmem:[%s1 + $0x30] sm:$0xff]
      %v181 = vld [vmem:[%s1 + $0x38] sm:$0xff]
      %v182 = vld [vmem:[%s1 + $0x40] sm:$0xff]
      %v183 = vld [vmem:[%s1 + $0x48] sm:$0xff]
      %v184 = vld [vmem:[%s1 + $0x50] sm:$0xff]
      %v185 = vld [vmem:[%s1 + $0x58] sm:$0xff]
      %v186 = vld [vmem:[%s1 + $0x60] sm:$0xff]
      %v187 = vld [vmem:[%s1 + $0x68] sm:$0xff]
      %v188 = vld [vmem:[%s1 + $0x70] sm:$0xff]
      %v189 = vld [vmem:[%s1 + $0x78] sm:$0xff]
      %v190 = vld [vmem:[%s1 + $0x80] sm:$0xff]
      %v191 = vld [vmem:[%s1 + $0x88] sm:$0xff]
      %v192 = vld [vmem:[%s1 + $0x90] sm:$0xff]
      %v193 = vld [vmem:[%s1 + $0x98] sm:$0xff]
      %v194 = vld [vmem:[%s1 + $0xa0] sm:$0xff]
      %v195 = vld [vmem:[%s1 + $0xa8] sm:$0xff]
      %v196 = vld [vmem:[%s1 + $0xb0] sm:$0xff]
      %v197 = vld [vmem:[%s1 + $0xb8] sm:$0xff]
      %v198 = vld [vmem:[%s1 + $0xc0] sm:$0xff]
      %v199 = vld [vmem:[%s1 + $0xc8] sm:$0xff]
      %v200 = vld [vmem:[%s1 + $0xd0] sm:$0xff]
      %v201 = vld [vmem:[%s1 + $0xd8] sm:$0xff]
      %v202 = vld [vmem:[%s1 + $0xe0] sm:$0xff]
      %v203 = vld [vmem:[%s1 + $0xe8] sm:$0xff]
      %v204 = vld [vmem:[%s1 + $0xf0] sm:$0xff]
      %v205 = vld [vmem:[%s1 + $0xf8] sm:$0xff]
      %v208 = vunpack.c.l.b16 %v172
      %v209 = vunpack.c.h.b16 %v172
      %v210 = vunpack.c.l.b16 %v173
      %v211 = vunpack.c.h.b16 %v173
      %v212 = vpack.c.b16 %v210, %v208
      %v213 = vpack.c.b16 %v211, %v209
      %v248 = vunpack.c.l.b16 %v174
      %v249 = vunpack.c.h.b16 %v174
      %v250 = vunpack.c.l.b16 %v175
      %v251 = vunpack.c.h.b16 %v175
      %v252 = vunpack.c.l.b16 %v176
      %v253 = vunpack.c.h.b16 %v176
      %v254 = vunpack.c.l.b16 %v177
      %v255 = vunpack.c.h.b16 %v177
      %v256 = vunpack.c.l.b16 %v178
      %v257 = vunpack.c.h.b16 %v178
      %v258 = vunpack.c.l.b16 %v179
      %v259 = vunpack.c.h.b16 %v179
      %v260 = vunpack.c.l.b16 %v180
      %v261 = vunpack.c.h.b16 %v180
      %v262 = vunpack.c.l.b16 %v181
      %v263 = vunpack.c.h.b16 %v181
      %v264 = vunpack.c.l.b16 %v182
      %v265 = vunpack.c.h.b16 %v182
      %v266 = vunpack.c.l.b16 %v183
      %v267 = vunpack.c.h.b16 %v183
      %v268 = vunpack.c.l.b16 %v184
      %v269 = vunpack.c.h.b16 %v184
      %v270 = vunpack.c.l.b16 %v185
      %v271 = vunpack.c.h.b16 %v185
      %v272 = vunpack.c.l.b16 %v186
      %v273 = vunpack.c.h.b16 %v186
      %v274 = vunpack.c.l.b16 %v187
      %v275 = vunpack.c.h.b16 %v187
      %v276 = vunpack.c.l.b16 %v188
      %v277 = vunpack.c.h.b16 %v188
      %v278 = vunpack.c.l.b16 %v189
      %v279 = vunpack.c.h.b16 %v189
      %v280 = vunpack.c.l.b16 %v190
      %v281 = vunpack.c.h.b16 %v190
      %v282 = vunpack.c.l.b16 %v191
      %v283 = vunpack.c.h.b16 %v191
      %v284 = vunpack.c.l.b16 %v192
      %v285 = vunpack.c.h.b16 %v192
      %v286 = vunpack.c.l.b16 %v193
      %v287 = vunpack.c.h.b16 %v193
      %v288 = vunpack.c.l.b16 %v194
      %v289 = vunpack.c.h.b16 %v194
      %v290 = vunpack.c.l.b16 %v195
      %v291 = vunpack.c.h.b16 %v195
      %v292 = vunpack.c.l.b16 %v196
      %v293 = vunpack.c.h.b16 %v196
      %v294 = vunpack.c.l.b16 %v197
      %v295 = vunpack.c.h.b16 %v197
      %v296 = vunpack.c.l.b16 %v198
      %v297 = vunpack.c.h.b16 %v198
      %v298 = vunpack.c.l.b16 %v199
      %v299 = vunpack.c.h.b16 %v199
      %v300 = vunpack.c.l.b16 %v200
      %v301 = vunpack.c.h.b16 %v200
      %v302 = vunpack.c.l.b16 %v201
      %v303 = vunpack.c.h.b16 %v201
      %v304 = vunpack.c.l.b16 %v202
      %v305 = vunpack.c.h.b16 %v202
      %v306 = vunpack.c.l.b16 %v203
      %v307 = vunpack.c.h.b16 %v203
      %v308 = vunpack.c.l.b16 %v204
      %v309 = vunpack.c.h.b16 %v204
      %v310 = vunpack.c.l.b16 %v205
      %v311 = vunpack.c.h.b16 %v205
      %v312 = vpack.c.b16 %v250, %v248
      %v313 = vpack.c.b16 %v251, %v249
      %v314 = vpack.c.b16 %v254, %v252
      %v315 = vpack.c.b16 %v255, %v253
      %v316 = vpack.c.b16 %v258, %v256
      %v317 = vpack.c.b16 %v259, %v257
      %v318 = vpack.c.b16 %v262, %v260
      %v319 = vpack.c.b16 %v263, %v261
      %v320 = vpack.c.b16 %v266, %v264
      %v321 = vpack.c.b16 %v267, %v265
      %v322 = vpack.c.b16 %v270, %v268
      %v323 = vpack.c.b16 %v271, %v269
      %v324 = vpack.c.b16 %v274, %v272
      %v325 = vpack.c.b16 %v275, %v273
      %v326 = vpack.c.b16 %v278, %v276
      %v327 = vpack.c.b16 %v279, %v277
      %v328 = vpack.c.b16 %v282, %v280
      %v329 = vpack.c.b16 %v283, %v281
      %v330 = vpack.c.b16 %v286, %v284
      %v331 = vpack.c.b16 %v287, %v285
      %v332 = vpack.c.b16 %v290, %v288
      %v333 = vpack.c.b16 %v291, %v289
      %v334 = vpack.c.b16 %v294, %v292
      %v335 = vpack.c.b16 %v295, %v293
      %v336 = vpack.c.b16 %v298, %v296
      %v337 = vpack.c.b16 %v299, %v297
      %v338 = vpack.c.b16 %v302, %v300
      %v339 = vpack.c.b16 %v303, %v301
      %v340 = vpack.c.b16 %v306, %v304
      %v341 = vpack.c.b16 %v307, %v305
      %v342 = vpack.c.b16 %v310, %v308
      %v343 = vpack.c.b16 %v311, %v309
      %376 = vmatprep.subr.bf16.mxu0 %v327
      %377 = vmatpush1.bf16.msra.mxu0 %v326
      %378 = vmatprep.subr.bf16.mxu0 %v325
      %379 = vmatpush1.bf16.msra.mxu0 %v324
      %380 = vmatprep.subr.bf16.mxu0 %v323
      %381 = vmatpush1.bf16.msra.mxu0 %v322
      %382 = vmatprep.subr.bf16.mxu0 %v321
      %383 = vmatpush1.bf16.msra.mxu0 %v320
      %384 = vmatprep.subr.bf16.mxu0 %v319
      %385 = vmatpush1.bf16.msra.mxu0 %v318
      %386 = vmatprep.subr.bf16.mxu0 %v317
      %387 = vmatpush1.bf16.msra.mxu0 %v316
      %388 = vmatprep.subr.bf16.mxu0 %v315
      %389 = vmatpush1.bf16.msra.mxu0 %v314
      %390 = vmatprep.subr.bf16.mxu0 %v313
      %391 = vmatpush1.bf16.msra.mxu0 %v312
      %392 = vmatprep.subr.bf16.mxu0 %v343
      %393 = vmatpush2.bf16.msra.mxu0 %v342
      %394 = vmatprep.subr.bf16.mxu0 %v341
      %395 = vmatpush2.bf16.msra.mxu0 %v340
      %396 = vmatprep.subr.bf16.mxu0 %v339
      %397 = vmatpush2.bf16.msra.mxu0 %v338
      %398 = vmatprep.subr.bf16.mxu0 %v337
      %399 = vmatpush2.bf16.msra.mxu0 %v336
      %400 = vmatprep.subr.bf16.mxu0 %v335
      %401 = vmatpush2.bf16.msra.mxu0 %v334
      %402 = vmatprep.subr.bf16.mxu0 %v333
      %403 = vmatpush2.bf16.msra.mxu0 %v332
      %404 = vmatprep.subr.bf16.mxu0 %v331
      %405 = vmatpush2.bf16.msra.mxu0 %v330
      %406 = vmatprep.subr.bf16.mxu0 %v329
      %407 = vmatpush2.bf16.msra.mxu0 %v328
      %408 = vmatprep.mubr.bf16.mxu0 %v213
      %409 = vmatmul.mubr.bf16.gmra.mxu0 %v212
      %v410 = vpop.f32.mrf.mxu0
      %v411 = vadd.f32 0.0, %v410
      %v412 = vpop.f32.mrf.mxu0
      %v413 = vadd.f32 0.0, %v412
      %v414 = vpop.f32.mrf.mxu0
      %v415 = vadd.f32 0.0, %v414
      %v416 = vpop.f32.mrf.mxu0
      %v417 = vadd.f32 0.0, %v416
      %418 = vdwg.mxu0
      %s419 = sld [smem:[#allocation2]]
      %vm420 = vcmp.gt.f32.partialorder %v411, 0.0
      %vm421 = vcmp.gt.f32.partialorder %v413, 0.0
      %vm422 = vcmp.gt.f32.partialorder %v415, 0.0
      %vm423 = vcmp.gt.f32.partialorder %v417, 0.0
      %v424 = vstv %s419
      %v425 = vmul.f32 %v424, %v411
      %v426 = vmul.f32 %v424, %v413
      %v427 = vmul.f32 %v424, %v415
      %v428 = vmul.f32 %v424, %v417
      %v429 = vsel %vm420, %v411, %v425
      %v430 = vsel %vm421, %v413, %v426
      %v431 = vsel %vm422, %v415, %v427
      %v432 = vsel %vm423, %v417, %v428
      %433 = vst [vmem:[%s171] sm:$0xff] %v429
      %434 = vst [vmem:[%s171 + $0x8] sm:$0xff] %v430
      %435 = vst [vmem:[%s171 + $0x10] sm:$0xff] %v431
      %436 = vst [vmem:[%s171 + $0x18] sm:$0xff] %v432
      %p437 = scmp.lt.s32.totalorder %s15, 1
      %s438 = scalar_select %p437, %s15, 1
      %s439 = smul.addr %s438, 4
      %s440 = smul.addr %s439, 8
      %s441 = scalar_lea.vmem %s3, %s440
      // Predicated region
      $region33: #{upsample_block.1} parent=31 // pred_check
        %p442 = pneg %p101
      $region34: #{upsample_block.1} parent=31 // pred_check_branch
        %444 = sbr.rel (%p442) target = $region36
      $region35: #{upsample_block.1} parent=31 // pred_region
        _
      $region36: #{upsample_block.1} parent=31 // pred_fallthru
        _
    $region32: #{upsample_block.1} parent=5 // pred_fallthru
      _
    %p445 = scmp.le.s32.totalorder 2, %s10
    // Predicated region
    $region37: #{upsample_block.1} parent=5 // pred_check
      %p446 = pneg %p445
    $region38: #{upsample_block.1} parent=5 // pred_check_branch
      %448 = sbr.rel (%p446) target = $region40
    $region39: #{upsample_block.1} parent=5 // pred_region
      %s449 = ssub.s32 %s10, 2
      // Predicated region
      $region41: #{upsample_block.1} parent=39 // pred_check
        %p450 = pneg %p107
      $region42: #{upsample_block.1} parent=39 // pred_check_branch
        %452 = sbr.rel (%p450) target = $region44
      $region43: #{upsample_block.1} parent=39 // pred_region
        %p453 = scmp.lt.s32.totalorder %s16, 1
        %s454 = scalar_select %p453, %s16, 1
        %s455 = smul.addr %s454, 4
        %s456 = smul.addr %s455, 8
        %s457 = scalar_lea.vmem %s3, %s456
      $region44: #{upsample_block.1} parent=39 // pred_fallthru
        _
    $region40: #{upsample_block.1} parent=5 // pred_fallthru
      _
  $region6: #{upsample_block.1} parent=0 // loop_footer
    %s14 = sadd.s32 1, %s10
  $region7: #{upsample_block.1} parent=0 // loop_footer_branch
    %9 = sbr.rel target = $region3
  $region8: #{upsample_block.1} parent=0 // loop_exit
    _

</llo_original>
